<compile_context>
chip_gen: v6e
topology: v6e:2x2x1
jax: 0.10.0
libtpu: 0.0.40
codegen_flags: <defaults>
</compile_context>

<pallas_src>
import jax
import jax.numpy as jnp
from jax import lax
from jax.experimental import pallas as pl
from jax.experimental.pallas import tpu as pltpu


def _round_up(n, m):
    return ((n + m - 1) // m) * m


def _mlp_kernel(x_ref, w1_ref, b1_ref, w2_ref, b2_ref, w3_ref, b3_ref, o_ref):
    # layer 1: (TB, D_pad) @ (D_pad, 128) + (1, 128), ReLU
    h1 = jnp.dot(x_ref[...], w1_ref[...], preferred_element_type=jnp.float32)
    h1 = jnp.maximum(h1 + b1_ref[...], 0.0).astype(w2_ref.dtype)
    # layer 2: (TB, 128) @ (128, 128) + (1, 128), ReLU
    h2 = jnp.dot(h1, w2_ref[...], preferred_element_type=jnp.float32)
    h2 = jnp.maximum(h2 + b2_ref[...], 0.0).astype(w3_ref.dtype)
    # layer 3, lane-dense: w3_rows (8, 128) contracted with h2 (TB, 128) over
    # the hidden dim (the standard q @ k^T MXU pattern) -> (8, TB).  Batch is
    # now on the lane axis, so the store below is a full-width vector store.
    # Only row 0 of w3_rows is non-zero, so only row 0 of y is meaningful;
    # rows 1..7 are ignored by the wrapper.
    y = lax.dot_general(
        w3_ref[...], h2,
        dimension_numbers=(((1,), (1,)), ((), ())),
        preferred_element_type=jnp.float32)            # (8, TB)
    o_ref[...] = (y + b3_ref[...]).astype(o_ref.dtype)  # (8, TB), lane-dense


def regression_model_forward(x, params, *, tile_batch=1024, use_bf16=False):
    """x: (B, input_dim) float32. params: dict of w1,b1,w2,b2,w3,b3."""
    w1, b1 = params["w1"], params["b1"]
    w2, b2 = params["w2"], params["b2"]
    w3, b3 = params["w3"], params["b3"]

    B, D = x.shape
    H1 = w1.shape[1]          # 30
    H2 = w2.shape[1]          # 20

    # aligned (padded) dims
    DP = _round_up(D, 8)      # feature dim, sublane aligned
    H1P = _round_up(H1, 128)  # hidden dims, lane aligned (-> 128)
    H2P = _round_up(H2, 128)
    TB = min(tile_batch, _round_up(B, 8))   # batch tile (multiple of 8)
    num_tiles = pl.cdiv(B, TB)
    B_pad = num_tiles * TB

    in_dtype = jnp.bfloat16 if use_bf16 else jnp.float32

    # One-time host-side zero padding to tile-aligned shapes (numerically
    # exact: padded weight rows/cols are zero and ReLU(0) = 0).
    xp = jnp.zeros((B_pad, DP), in_dtype).at[:B, :D].set(x.astype(in_dtype))
    w1p = jnp.zeros((DP, H1P), in_dtype).at[:D, :H1].set(w1.astype(in_dtype))
    b1p = jnp.zeros((1, H1P), jnp.float32).at[:, :H1].set(b1)
    w2p = jnp.zeros((H1P, H2P), in_dtype).at[:H1, :H2].set(w2.astype(in_dtype))
    b2p = jnp.zeros((1, H2P), jnp.float32).at[:, :H2].set(b2)
    # Final layer stored as 8 rows (row 0 real, rows 1..7 zero) so the last
    # matmul produces an (8, TB) tile with batch on the lane axis.
    w3p = jnp.zeros((8, H2P), in_dtype).at[0, :H2].set(w3[:, 0].astype(in_dtype))
    b3p = b3.reshape(1, 1).astype(jnp.float32)

    out = pl.pallas_call(
        _mlp_kernel,
        out_shape=jax.ShapeDtypeStruct((8, B_pad), jnp.float32),
        grid=(num_tiles,),
        in_specs=[
            pl.BlockSpec((TB, DP), lambda i: (i, 0)),     # x: tiled over batch
            pl.BlockSpec((DP, H1P), lambda i: (0, 0)),    # w1: VMEM-resident
            pl.BlockSpec((1, H1P), lambda i: (0, 0)),     # b1
            pl.BlockSpec((H1P, H2P), lambda i: (0, 0)),   # w2
            pl.BlockSpec((1, H2P), lambda i: (0, 0)),     # b2
            pl.BlockSpec((8, H2P), lambda i: (0, 0)),     # w3 (rows)
            pl.BlockSpec((1, 1), lambda i: (0, 0)),       # b3
        ],
        out_specs=pl.BlockSpec((8, TB), lambda i: (0, i)),  # lane-dense blocks
        compiler_params=pltpu.CompilerParams(
            dimension_semantics=("parallel",)),
    )(xp, w1p, b1p, w2p, b2p, w3p, b3p)

    # Row 0 holds the real result; drop batch padding and restore (B, 1).
    return out[0, :B].reshape(B, 1)


def init_params(key, input_dim):
    """Deterministic init mimicking nn.Linear's U(-1/sqrt(fan_in), 1/sqrt(fan_in))."""
    ks = jax.random.split(key, 6)

    def linear(kw, kb, fan_in, fan_out):
        bound = 1.0 / jnp.sqrt(jnp.float32(fan_in))
        w = jax.random.uniform(kw, (fan_in, fan_out), jnp.float32, -bound, bound)
        b = jax.random.uniform(kb, (1, fan_out), jnp.float32, -bound, bound)
        return w, b

    w1, b1 = linear(ks[0], ks[1], input_dim, 30)
    w2, b2 = linear(ks[2], ks[3], 30, 20)
    w3, b3 = linear(ks[4], ks[5], 20, 1)
    return {"w1": w1, "b1": b1, "w2": w2, "b2": b2, "w3": w3, "b3": b3}


def _reference(x, params):
    h1 = jnp.maximum(x @ params["w1"] + params["b1"], 0.0)
    h2 = jnp.maximum(h1 @ params["w2"] + params["b2"], 0.0)
    return h2 @ params["w3"] + params["b3"]


if __name__ == "__main__":
    key = jax.random.PRNGKey(0)
    k_x, k_p, k_x2 = jax.random.split(key, 3)

    batch = 8
    input_dim = 5  # student-performance feature count
    x = jax.random.normal(k_x, (batch, input_dim), dtype=jnp.float32)
    params = init_params(k_p, input_dim)

    # small demo (single tile)
    y = jax.block_until_ready(regression_model_forward(x, params))
    y_ref = _reference(x, params)
    assert y.shape == (batch, 1)
    assert jnp.allclose(y, y_ref, atol=1e-5, rtol=1e-5)

    # multi-tile path: batch not divisible by the tile -> padded tail tile
    x2 = jax.random.normal(k_x2, (300, input_dim), dtype=jnp.float32)
    y2 = jax.block_until_ready(
        regression_model_forward(x2, params, tile_batch=128))
    assert y2.shape == (300, 1)
    assert jnp.allclose(y2, _reference(x2, params), atol=1e-5, rtol=1e-5)

    # optional bf16 fast path (halves HBM traffic; f32 accumulation)
    y_bf16 = jax.block_until_ready(
        regression_model_forward(x, params, use_bf16=True))
    assert y_bf16.shape == (batch, 1)
    assert jnp.allclose(y_bf16, y_ref, atol=5e-2, rtol=5e-2)

    print("KERNEL_OK")
</pallas_src>

<mosaic_0001>
module attributes {stable_mosaic.version = 11 : i64} {
  func.func @_mlp_kernel(%arg0: i32, %arg1: memref<8x8xf32, #tpu.memory_space<vmem>>, %arg2: memref<8x128xf32, #tpu.memory_space<vmem>>, %arg3: memref<1x128xf32, #tpu.memory_space<vmem>>, %arg4: memref<128x128xf32, #tpu.memory_space<vmem>>, %arg5: memref<1x128xf32, #tpu.memory_space<vmem>>, %arg6: memref<8x128xf32, #tpu.memory_space<vmem>>, %arg7: memref<1x1xf32, #tpu.memory_space<vmem>>, %arg8: memref<8x8xf32, #tpu.memory_space<vmem>>) attributes {dimension_semantics = [#tpu.dimension_semantics<parallel>], iteration_bounds = array<i64: 1>, scalar_prefetch = 0 : i64, scratch_operands = 0 : i64, tpu.core_type = #tpu.core_type<tc>, window_params = [{transform_indices = @transform_0, window_bounds = array<i64: 8, 8>}, {pipeline_mode = #tpu.pipeline_mode<synchronous>, transform_indices = @transform_1, window_bounds = array<i64: 8, 128>}, {pipeline_mode = #tpu.pipeline_mode<synchronous>, transform_indices = @transform_2, window_bounds = array<i64: 1, 128>}, {pipeline_mode = #tpu.pipeline_mode<synchronous>, transform_indices = @transform_3, window_bounds = array<i64: 128, 128>}, {pipeline_mode = #tpu.pipeline_mode<synchronous>, transform_indices = @transform_4, window_bounds = array<i64: 1, 128>}, {pipeline_mode = #tpu.pipeline_mode<synchronous>, transform_indices = @transform_5, window_bounds = array<i64: 8, 128>}, {pipeline_mode = #tpu.pipeline_mode<synchronous>, transform_indices = @transform_6, window_bounds = array<i64: 1, 1>}, {transform_indices = @transform_7, window_bounds = array<i64: 8, 8>}]} {
    %c0 = arith.constant 0 : index
    %c0_0 = arith.constant 0 : index
    %0 = vector.load %arg1[%c0, %c0_0] : memref<8x8xf32, #tpu.memory_space<vmem>>, vector<8x8xf32>
    %c0_1 = arith.constant 0 : index
    %c0_2 = arith.constant 0 : index
    %1 = vector.load %arg2[%c0_1, %c0_2] : memref<8x128xf32, #tpu.memory_space<vmem>>, vector<8x128xf32>
    %cst = arith.constant dense<0.000000e+00> : vector<8x128xf32>
    %2 = tpu.matmul %0, %1, %cst {dimension_numbers = #tpu.dot_dimension_numbers<[1], [0], [0], [1], [0, 0, 1, 1], [], []>} : vector<8x8xf32>, vector<8x128xf32>, vector<8x128xf32> -> vector<8x128xf32>
    %c0_3 = arith.constant 0 : index
    %c0_4 = arith.constant 0 : index
    %3 = vector.load %arg3[%c0_3, %c0_4] : memref<1x128xf32, #tpu.memory_space<vmem>>, vector<1x128xf32>
    %4 = vector.broadcast %3 : vector<1x128xf32> to vector<8x128xf32>
    %5 = arith.addf %2, %4 : vector<8x128xf32>
    %cst_5 = arith.constant 0.000000e+00 : f32
    %6 = vector.broadcast %cst_5 : f32 to vector<8x128xf32>
    %7 = arith.maximumf %5, %6 : vector<8x128xf32>
    %c0_6 = arith.constant 0 : index
    %c0_7 = arith.constant 0 : index
    %8 = vector.load %arg4[%c0_6, %c0_7] : memref<128x128xf32, #tpu.memory_space<vmem>>, vector<128x128xf32>
    %cst_8 = arith.constant dense<0.000000e+00> : vector<8x128xf32>
    %9 = tpu.matmul %7, %8, %cst_8 {dimension_numbers = #tpu.dot_dimension_numbers<[1], [0], [0], [1], [0, 0, 1, 1], [], []>} : vector<8x128xf32>, vector<128x128xf32>, vector<8x128xf32> -> vector<8x128xf32>
    %c0_9 = arith.constant 0 : index
    %c0_10 = arith.constant 0 : index
    %10 = vector.load %arg5[%c0_9, %c0_10] : memref<1x128xf32, #tpu.memory_space<vmem>>, vector<1x128xf32>
    %11 = vector.broadcast %10 : vector<1x128xf32> to vector<8x128xf32>
    %12 = arith.addf %9, %11 : vector<8x128xf32>
    %cst_11 = arith.constant 0.000000e+00 : f32
    %13 = vector.broadcast %cst_11 : f32 to vector<8x128xf32>
    %14 = arith.maximumf %12, %13 : vector<8x128xf32>
    %c0_12 = arith.constant 0 : index
    %c0_13 = arith.constant 0 : index
    %15 = vector.load %arg6[%c0_12, %c0_13] : memref<8x128xf32, #tpu.memory_space<vmem>>, vector<8x128xf32>
    %cst_14 = arith.constant dense<0.000000e+00> : vector<8x8xf32>
    %16 = tpu.matmul %15, %14, %cst_14 {dimension_numbers = #tpu.dot_dimension_numbers<[1], [1], [0], [0], [0, 0, 1, 0], [], []>} : vector<8x128xf32>, vector<8x128xf32>, vector<8x8xf32> -> vector<8x8xf32>
    %c0_15 = arith.constant 0 : index
    %c0_16 = arith.constant 0 : index
    %17 = vector.load %arg7[%c0_15, %c0_16] : memref<1x1xf32, #tpu.memory_space<vmem>>, vector<1x1xf32>
    %18 = vector.broadcast %17 : vector<1x1xf32> to vector<8x8xf32>
    %19 = arith.addf %16, %18 : vector<8x8xf32>
    %c0_17 = arith.constant 0 : index
    %c0_18 = arith.constant 0 : index
    %20 = vector.load %arg8[%c0_17, %c0_18] : memref<8x8xf32, #tpu.memory_space<vmem>>, vector<8x8xf32>
    tpu.vector_store %arg8[%c0_17, %c0_18], %19 {strides = array<i32>} : memref<8x8xf32, #tpu.memory_space<vmem>>, vector<8x8xf32>,
    return
  }
  func.func @transform_0(%arg0: i32) -> (i32, i32) {
    %c0_i32 = arith.constant 0 : i32
    %c0_i32_0 = arith.constant 0 : i32
    return %arg0, %c0_i32 : i32, i32
  }
  func.func @transform_1(%arg0: i32) -> (i32, i32) {
    %c0_i32 = arith.constant 0 : i32
    %c0_i32_0 = arith.constant 0 : i32
    %c0_i32_1 = arith.constant 0 : i32
    return %c0_i32, %c0_i32_0 : i32, i32
  }
  func.func @transform_2(%arg0: i32) -> (i32, i32) {
    %c0_i32 = arith.constant 0 : i32
    %c0_i32_0 = arith.constant 0 : i32
    %c0_i32_1 = arith.constant 0 : i32
    return %c0_i32, %c0_i32_0 : i32, i32
  }
  func.func @transform_3(%arg0: i32) -> (i32, i32) {
    %c0_i32 = arith.constant 0 : i32
    %c0_i32_0 = arith.constant 0 : i32
    %c0_i32_1 = arith.constant 0 : i32
    return %c0_i32, %c0_i32_0 : i32, i32
  }
  func.func @transform_4(%arg0: i32) -> (i32, i32) {
    %c0_i32 = arith.constant 0 : i32
    %c0_i32_0 = arith.constant 0 : i32
    %c0_i32_1 = arith.constant 0 : i32
    return %c0_i32, %c0_i32_0 : i32, i32
  }
  func.func @transform_5(%arg0: i32) -> (i32, i32) {
    %c0_i32 = arith.constant 0 : i32
    %c0_i32_0 = arith.constant 0 : i32
    %c0_i32_1 = arith.constant 0 : i32
    return %c0_i32, %c0_i32_0 : i32, i32
  }
  func.func @transform_6(%arg0: i32) -> (i32, i32) {
    %c0_i32 = arith.constant 0 : i32
    %c0_i32_0 = arith.constant 0 : i32
    %c0_i32_1 = arith.constant 0 : i32
    return %c0_i32, %c0_i32_0 : i32, i32
  }
  func.func @transform_7(%arg0: i32) -> (i32, i32) {
    %c0_i32 = arith.constant 0 : i32
    %c0_i32_0 = arith.constant 0 : i32
    return %c0_i32, %arg0 : i32, i32
  }
}

</mosaic_0001>

<llo_original>
// kernel: tpu_custom_call.1
$region0: #{tpu_custom_call.1}
  #allocation0 [shape = 'u32[]', space=smem, size = 0x4, offset = 0x4, fixed_abs, tag = 'smem constant byte address 0x4 - core index']
  #allocation1 [shape = 'u32[144,128]{1,0:T(1,128)}', space=vmem, size = 0x12000, scoped, tag = 'internal scratch']
  #allocation2 [shape = 'f32[1,1]{1,0:T(1,128)S(1)}', space=vmem, size = 0x200, scoped, tag = 'scoped memory for tpu_custom_call.1']
  %s0 = inlined_call_operand.hbm [shape: f32[8,8], index: 0, kind: input, shape index: {}]
  %s1 = inlined_call_operand.hbm [shape: f32[8,128], index: 1, kind: input, shape index: {}]
  %s2 = inlined_call_operand.vmem [shape: f32[1,128], index: 2, kind: input, shape index: {}]
  %s3 = inlined_call_operand.hbm [shape: f32[128,128], index: 3, kind: input, shape index: {}]
  %s4 = inlined_call_operand.vmem [shape: f32[1,128], index: 4, kind: input, shape index: {}]
  %s5 = inlined_call_operand.vmem [shape: f32[8,128], index: 5, kind: input, shape index: {}]
  %s6 = inlined_call_operand.<no memory space> [shape: f32[1,1], index: 6, kind: input, shape index: {}]
  %s7 = inlined_call_operand.hbm [shape: f32[8,8], index: 7, kind: output, shape index: {}]
  %s8 = sld [smem:[#allocation0]]
  $region50: #{tpu_custom_call.1} parent=0
    _
  %s10 = ssub.s32 1, %s8
  %s11 = scalar_select 0, %s10, %s8
  %v12 = vstv %s6
  %13 = vst [vmem:[#allocation2] sm:$0x1] %v12
  $region1: #{tpu_custom_call.1} parent=0
    #allocation3 [shape = 'u8[4096]{0}', space=vmem, size = 0x1000, scoped, tag = 'input window, operand 0, single buffered']
    #allocation4 [shape = 's32[1]{0}', space=sflag, size = 0x4, scoped, tag = 'scoped memory for tpu_custom_call.1']
    #allocation5 [shape = 's32[1]{0}', space=sflag, size = 0x4, scoped, tag = 'scoped memory for tpu_custom_call.1']
    #allocation6 [shape = 'u8[4096]{0}', space=vmem, size = 0x1000, scoped, tag = 'input window, operand 1, single buffered']
    #allocation7 [shape = 's32[1]{0}', space=sflag, size = 0x4, scoped, tag = 'scoped memory for tpu_custom_call.1']
    #allocation8 [shape = 'u8[65536]{0}', space=vmem, size = 0x10000, scoped, tag = 'input window, operand 3, single buffered']
    #allocation9 [shape = 'u8[4096]{0}', space=vmem, size = 0x1000, scoped, tag = 'output window, operand 0, single buffered']
    %14 = vsyncpa [#allocation4], 0
    %15 = vsyncpa [#allocation7], 0
    %16 = vsyncpa [#allocation5], 0
    // Predicated region
    $region2: #{tpu_custom_call.1} parent=1 // pred_check
      _
    $region3: #{tpu_custom_call.1} parent=1 // pred_check_branch
      %18 = sbr.rel (0) target = $region5
    $region4: #{tpu_custom_call.1} parent=1 // pred_region
      %s20 = ssub.s32 128, 128
      %21 = vsyncadd [#allocation4], %s20
      %s23 = sshll.u32 [#allocation3], 4
      %s24 = int_to_ptr.vmem [resolvable:$true] %s23
      %26 = dma.hbm_to_vmem [thread:$0]  %s0, 128, %s24, [#allocation4]
    $region5: #{tpu_custom_call.1} parent=1 // pred_fallthru
      _
    // Predicated region
    $region6: #{tpu_custom_call.1} parent=1 // pred_check
      _
    $region7: #{tpu_custom_call.1} parent=1 // pred_check_branch
      %28 = sbr.rel (0) target = $region9
    $region8: #{tpu_custom_call.1} parent=1 // pred_region
      %s30 = ssub.s32 128, 128
      %31 = vsyncadd [#allocation7], %s30
      %s33 = sshll.u32 [#allocation6], 4
      %s34 = int_to_ptr.vmem [resolvable:$true] %s33
      %36 = dma.hbm_to_vmem [thread:$0]  %s1, 128, %s34, [#allocation7]
    $region9: #{tpu_custom_call.1} parent=1 // pred_fallthru
      _
    // Predicated region
    $region10: #{tpu_custom_call.1} parent=1 // pred_check
      _
    $region11: #{tpu_custom_call.1} parent=1 // pred_check_branch
      %38 = sbr.rel (0) target = $region13
    $region12: #{tpu_custom_call.1} parent=1 // pred_region
      _
    $region13: #{tpu_custom_call.1} parent=1 // pred_fallthru
      _
    // Predicated region
    $region14: #{tpu_custom_call.1} parent=1 // pred_check
      _
    $region15: #{tpu_custom_call.1} parent=1 // pred_check_branch
      %40 = sbr.rel (0) target = $region17
    $region16: #{tpu_custom_call.1} parent=1 // pred_region
      %s42 = ssub.s32 2048, 2048
      %43 = vsyncadd [#allocation7], %s42
      %s44 = sshll.u32 [#allocation8], 4
      %s45 = int_to_ptr.vmem [resolvable:$true] %s44
      %50 = dma.hbm_to_vmem [thread:$0]  %s3, 2048, %s45, [#allocation7], 128, 128, 8
    $region17: #{tpu_custom_call.1} parent=1 // pred_fallthru
      _
    // Predicated region
    $region18: #{tpu_custom_call.1} parent=1 // pred_check
      _
    $region19: #{tpu_custom_call.1} parent=1 // pred_check_branch
      %52 = sbr.rel (0) target = $region21
    $region20: #{tpu_custom_call.1} parent=1 // pred_region
      _
    $region21: #{tpu_custom_call.1} parent=1 // pred_fallthru
      _
    // Predicated region
    $region22: #{tpu_custom_call.1} parent=1 // pred_check
      _
    $region23: #{tpu_custom_call.1} parent=1 // pred_check_branch
      %54 = sbr.rel (0) target = $region25
    $region24: #{tpu_custom_call.1} parent=1 // pred_region
      _
    $region25: #{tpu_custom_call.1} parent=1 // pred_fallthru
      _
    // Predicated region
    $region26: #{tpu_custom_call.1} parent=1 // pred_check
      _
    $region27: #{tpu_custom_call.1} parent=1 // pred_check_branch
      %56 = sbr.rel (0) target = $region29
    $region28: #{tpu_custom_call.1} parent=1 // pred_region
      _
    $region29: #{tpu_custom_call.1} parent=1 // pred_fallthru
      _
    // Predicated region
    $region30: #{tpu_custom_call.1} parent=1 // pred_check
      _
    $region31: #{tpu_custom_call.1} parent=1 // pred_check_branch
      %58 = sbr.rel (0) target = $region33
    $region32: #{tpu_custom_call.1} parent=1 // pred_region
      %59 = dma.done [#allocation4], 128
    $region33: #{tpu_custom_call.1} parent=1 // pred_fallthru
      _
    // Predicated region
    $region34: #{tpu_custom_call.1} parent=1 // pred_check
      _
    $region35: #{tpu_custom_call.1} parent=1 // pred_check_branch
      %61 = sbr.rel (0) target = $region37
    $region36: #{tpu_custom_call.1} parent=1 // pred_region
      %62 = dma.done [#allocation7], 128
    $region37: #{tpu_custom_call.1} parent=1 // pred_fallthru
      _
    // Predicated region
    $region38: #{tpu_custom_call.1} parent=1 // pred_check
      _
    $region39: #{tpu_custom_call.1} parent=1 // pred_check_branch
      %64 = sbr.rel (0) target = $region41
    $region40: #{tpu_custom_call.1} parent=1 // pred_region
      %65 = dma.done [#allocation7], 2048
    $region41: #{tpu_custom_call.1} parent=1 // pred_fallthru
      _
    %v66 = vld [vmem:[#allocation3] sm:$0xff]
    %v67 = vld [vmem:[#allocation6] sm:$0xff]
    %v68 = vld [vmem:[%s2] sm:$0x1]
    %v70 = vlaneseq
    %v71 = vshrl.u32 %v70, 7
    %v72 = vsub.s32 0, %v71
    %v73 = vrot.slane %v68, %v72
    %vm75 = vcmask 64512
    %v77 = vsel %vm75, %v66, 0
    %79 = vmatprep.subr.mxu0 0.0
    %80 = vmatpush1.msra.mxu0 0.0
    %81 = vmatprep.subr.mxu0 0.0
    %82 = vmatpush1.msra.mxu0 0.0
    %83 = vmatprep.subr.mxu0 0.0
    %84 = vmatpush1.msra.mxu0 0.0
    %85 = vmatprep.subr.mxu0 0.0
    %86 = vmatpush1.msra.mxu0 0.0
    %87 = vmatprep.subr.mxu0 0.0
    %88 = vmatpush1.msra.mxu0 0.0
    %89 = vmatprep.subr.mxu0 0.0
    %90 = vmatpush1.msra.mxu0 0.0
    %91 = vmatprep.subr.mxu0 0.0
    %92 = vmatpush1.msra.mxu0 0.0
    %93 = vmatprep.subr.mxu0 0.0
    %94 = vmatpush1.msra.mxu0 0.0
    %95 = vmatprep.subr.mxu0 0.0
    %96 = vmatpush1.msra.mxu0 0.0
    %97 = vmatprep.subr.mxu0 0.0
    %98 = vmatpush1.msra.mxu0 0.0
    %99 = vmatprep.subr.mxu0 0.0
    %100 = vmatpush1.msra.mxu0 0.0
    %101 = vmatprep.subr.mxu0 0.0
    %102 = vmatpush1.msra.mxu0 0.0
    %103 = vmatprep.subr.mxu0 0.0
    %104 = vmatpush1.msra.mxu0 0.0
    %105 = vmatprep.subr.mxu0 0.0
    %106 = vmatpush1.msra.mxu0 0.0
    %107 = vmatprep.subr.mxu0 0.0
    %108 = vmatpush1.msra.mxu0 0.0
    %109 = vmatprep.subr.mxu0 0.0
    %110 = vmatpush1.msra.mxu0 %v67
    %111 = vmatprep.subr.mxu0 0.0
    %112 = vmatpush2.msra.mxu0 0.0
    %113 = vmatprep.subr.mxu0 0.0
    %114 = vmatpush2.msra.mxu0 0.0
    %115 = vmatprep.subr.mxu0 0.0
    %116 = vmatpush2.msra.mxu0 0.0
    %117 = vmatprep.subr.mxu0 0.0
    %118 = vmatpush2.msra.mxu0 0.0
    %119 = vmatprep.subr.mxu0 0.0
    %120 = vmatpush2.msra.mxu0 0.0
    %121 = vmatprep.subr.mxu0 0.0
    %122 = vmatpush2.msra.mxu0 0.0
    %123 = vmatprep.subr.mxu0 0.0
    %124 = vmatpush2.msra.mxu0 0.0
    %125 = vmatprep.subr.mxu0 0.0
    %126 = vmatpush2.msra.mxu0 0.0
    %127 = vmatprep.subr.mxu0 0.0
    %128 = vmatpush2.msra.mxu0 0.0
    %129 = vmatprep.subr.mxu0 0.0
    %130 = vmatpush2.msra.mxu0 0.0
    %131 = vmatprep.subr.mxu0 0.0
    %132 = vmatpush2.msra.mxu0 0.0
    %133 = vmatprep.subr.mxu0 0.0
    %134 = vmatpush2.msra.mxu0 0.0
    %135 = vmatprep.subr.mxu0 0.0
    %136 = vmatpush2.msra.mxu0 0.0
    %137 = vmatprep.subr.mxu0 0.0
    %138 = vmatpush2.msra.mxu0 0.0
    %139 = vmatprep.subr.mxu0 0.0
    %140 = vmatpush2.msra.mxu0 0.0
    %141 = vmatprep.subr.mxu0 0.0
    %142 = vmatpush2.msra.mxu0 0.0
    %143 = vmatprep.mubr.f32.mxu0 0.0
    %144 = vmatmul.mubr.f32.gmra.mxu0 %v77
    %v145 = vpop.f32.mrf.mxu0
    %v146 = vadd.f32 %v73, %v145
    %v147 = vpop.f32.mrf.mxu0
    %148 = vdwg.mxu0
    %v149 = vmax.f32 %v146, 0.0
    %v150 = vld [vmem:[#allocation8] sm:$0xff]
    %v151 = vld [vmem:[#allocation8 + $0x8] sm:$0xff]
    %v152 = vld [vmem:[#allocation8 + $0x10] sm:$0xff]
    %v153 = vld [vmem:[#allocation8 + $0x18] sm:$0xff]
    %v154 = vld [vmem:[#allocation8 + $0x20] sm:$0xff]
    %v155 = vld [vmem:[#allocation8 + $0x28] sm:$0xff]
    %v156 = vld [vmem:[#allocation8 + $0x30] sm:$0xff]
    %v157 = vld [vmem:[#allocation8 + $0x38] sm:$0xff]
    %v158 = vld [vmem:[#allocation8 + $0x40] sm:$0xff]
    %v159 = vld [vmem:[#allocation8 + $0x48] sm:$0xff]
    %v160 = vld [vmem:[#allocation8 + $0x50] sm:$0xff]
    %v161 = vld [vmem:[#allocation8 + $0x58] sm:$0xff]
    %v162 = vld [vmem:[#allocation8 + $0x60] sm:$0xff]
    %v163 = vld [vmem:[#allocation8 + $0x68] sm:$0xff]
    %v164 = vld [vmem:[#allocation8 + $0x70] sm:$0xff]
    %v165 = vld [vmem:[#allocation8 + $0x78] sm:$0xff]
    %v166 = vld [vmem:[%s4] sm:$0x1]
    %v168 = vlaneseq
    %v169 = vshrl.u32 %v168, 7
    %v170 = vsub.s32 0, %v169
    %v171 = vrot.slane %v166, %v170
    %173 = vmatprep.subr.mxu0 0.0
    %174 = vmatpush1.msra.mxu0 %v165
    %175 = vmatprep.subr.mxu0 0.0
    %176 = vmatpush1.msra.mxu0 %v164
    %177 = vmatprep.subr.mxu0 0.0
    %178 = vmatpush1.msra.mxu0 %v163
    %179 = vmatprep.subr.mxu0 0.0
    %180 = vmatpush1.msra.mxu0 %v162
    %181 = vmatprep.subr.mxu0 0.0
    %182 = vmatpush1.msra.mxu0 %v161
    %183 = vmatprep.subr.mxu0 0.0
    %184 = vmatpush1.msra.mxu0 %v160
    %185 = vmatprep.subr.mxu0 0.0
    %186 = vmatpush1.msra.mxu0 %v159
    %187 = vmatprep.subr.mxu0 0.0
    %188 = vmatpush1.msra.mxu0 %v158
    %189 = vmatprep.subr.mxu0 0.0
    %190 = vmatpush1.msra.mxu0 %v157
    %191 = vmatprep.subr.mxu0 0.0
    %192 = vmatpush1.msra.mxu0 %v156
    %193 = vmatprep.subr.mxu0 0.0
    %194 = vmatpush1.msra.mxu0 %v155
    %195 = vmatprep.subr.mxu0 0.0
    %196 = vmatpush1.msra.mxu0 %v154
    %197 = vmatprep.subr.mxu0 0.0
    %198 = vmatpush1.msra.mxu0 %v153
    %199 = vmatprep.subr.mxu0 0.0
    %200 = vmatpush1.msra.mxu0 %v152
    %201 = vmatprep.subr.mxu0 0.0
    %202 = vmatpush1.msra.mxu0 %v151
    %203 = vmatprep.subr.mxu0 0.0
    %204 = vmatpush1.msra.mxu0 %v150
    %205 = vmatprep.subr.mxu0 0.0
    %206 = vmatpush2.msra.mxu0 0.0
    %207 = vmatprep.subr.mxu0 0.0
    %208 = vmatpush2.msra.mxu0 0.0
    %209 = vmatprep.subr.mxu0 0.0
    %210 = vmatpush2.msra.mxu0 0.0
    %211 = vmatprep.subr.mxu0 0.0
    %212 = vmatpush2.msra.mxu0 0.0
    %213 = vmatprep.subr.mxu0 0.0
    %214 = vmatpush2.msra.mxu0 0.0
    %215 = vmatprep.subr.mxu0 0.0
    %216 = vmatpush2.msra.mxu0 0.0
    %217 = vmatprep.subr.mxu0 0.0
    %218 = vmatpush2.msra.mxu0 0.0
    %219 = vmatprep.subr.mxu0 0.0
    %220 = vmatpush2.msra.mxu0 0.0
    %221 = vmatprep.subr.mxu0 0.0
    %222 = vmatpush2.msra.mxu0 0.0
    %223 = vmatprep.subr.mxu0 0.0
    %224 = vmatpush2.msra.mxu0 0.0
    %225 = vmatprep.subr.mxu0 0.0
    %226 = vmatpush2.msra.mxu0 0.0
    %227 = vmatprep.subr.mxu0 0.0
    %228 = vmatpush2.msra.mxu0 0.0
    %229 = vmatprep.subr.mxu0 0.0
    %230 = vmatpush2.msra.mxu0 0.0
    %231 = vmatprep.subr.mxu0 0.0
    %232 = vmatpush2.msra.mxu0 0.0
    %233 = vmatprep.subr.mxu0 0.0
    %234 = vmatpush2.msra.mxu0 0.0
    %235 = vmatprep.subr.mxu0 0.0
    %236 = vmatpush2.msra.mxu0 0.0
    %237 = vmatprep.mubr.f32.mxu0 0.0
    %238 = vmatmul.mubr.f32.gmra.mxu0 %v149
    %v239 = vpop.f32.mrf.mxu0
    %v240 = vadd.f32 %v171, %v239
    %v241 = vpop.f32.mrf.mxu0
    %242 = vdwg.mxu0
    %v243 = vmax.f32 %v240, 0.0
    %v244 = vld [vmem:[%s5] sm:$0xff]
    %v245 = vld [vmem:[#allocation2] sm:$0x1]
    %v247 = vlaneseq
    %v248 = vshrl.u32 %v247, 7
    %v249 = vsub.s32 0, %v248
    %v250 = vrot.slane %v245, %v249
    %251 = vset.pattern.permute.xlu0 0
    %252 = vperm.xlu0 %251, %v250
    %v253 = vpop.permute.xlu0 %252
    %255 = vmatprep.subr.mxu0 0.0
    %256 = vmatpush1.xpose.msra.mxu0 0.0
    %257 = vmatprep.subr.mxu0 0.0
    %258 = vmatpush1.xpose.msra.mxu0 0.0
    %259 = vmatprep.subr.mxu0 0.0
    %260 = vmatpush1.xpose.msra.mxu0 0.0
    %261 = vmatprep.subr.mxu0 0.0
    %262 = vmatpush1.xpose.msra.mxu0 0.0
    %263 = vmatprep.subr.mxu0 0.0
    %264 = vmatpush1.xpose.msra.mxu0 0.0
    %265 = vmatprep.subr.mxu0 0.0
    %266 = vmatpush1.xpose.msra.mxu0 0.0
    %267 = vmatprep.subr.mxu0 0.0
    %268 = vmatpush1.xpose.msra.mxu0 0.0
    %269 = vmatprep.subr.mxu0 0.0
    %270 = vmatpush1.xpose.msra.mxu0 0.0
    %271 = vmatprep.subr.mxu0 0.0
    %272 = vmatpush1.xpose.msra.mxu0 0.0
    %273 = vmatprep.subr.mxu0 0.0
    %274 = vmatpush1.xpose.msra.mxu0 0.0
    %275 = vmatprep.subr.mxu0 0.0
    %276 = vmatpush1.xpose.msra.mxu0 0.0
    %277 = vmatprep.subr.mxu0 0.0
    %278 = vmatpush1.xpose.msra.mxu0 0.0
    %279 = vmatprep.subr.mxu0 0.0
    %280 = vmatpush1.xpose.msra.mxu0 0.0
    %281 = vmatprep.subr.mxu0 0.0
    %282 = vmatpush1.xpose.msra.mxu0 0.0
    %283 = vmatprep.subr.mxu0 0.0
    %284 = vmatpush1.xpose.msra.mxu0 0.0
    %285 = vmatprep.subr.mxu0 0.0
    %286 = vmatpush1.xpose.msra.mxu0 %v243
    %287 = vmatprep.subr.mxu0 0.0
    %288 = vmatpush2.xpose.msra.mxu0 0.0
    %289 = vmatprep.subr.mxu0 0.0
    %290 = vmatpush2.xpose.msra.mxu0 0.0
    %291 = vmatprep.subr.mxu0 0.0
    %292 = vmatpush2.xpose.msra.mxu0 0.0
    %293 = vmatprep.subr.mxu0 0.0
    %294 = vmatpush2.xpose.msra.mxu0 0.0
    %295 = vmatprep.subr.mxu0 0.0
    %296 = vmatpush2.xpose.msra.mxu0 0.0
    %297 = vmatprep.subr.mxu0 0.0
    %298 = vmatpush2.xpose.msra.mxu0 0.0
    %299 = vmatprep.subr.mxu0 0.0
    %300 = vmatpush2.xpose.msra.mxu0 0.0
    %301 = vmatprep.subr.mxu0 0.0
    %302 = vmatpush2.xpose.msra.mxu0 0.0
    %303 = vmatprep.subr.mxu0 0.0
    %304 = vmatpush2.xpose.msra.mxu0 0.0
    %305 = vmatprep.subr.mxu0 0.0
    %306 = vmatpush2.xpose.msra.mxu0 0.0
    %307 = vmatprep.subr.mxu0 0.0
    %308 = vmatpush2.xpose.msra.mxu0 0.0
    %309 = vmatprep.subr.mxu0 0.0
    %310 = vmatpush2.xpose.msra.mxu0 0.0
    %311 = vmatprep.subr.mxu0 0.0
    %312 = vmatpush2.xpose.msra.mxu0 0.0
    %313 = vmatprep.subr.mxu0 0.0
    %314 = vmatpush2.xpose.msra.mxu0 0.0
    %315 = vmatprep.subr.mxu0 0.0
    %316 = vmatpush2.xpose.msra.mxu0 0.0
    %317 = vmatprep.subr.mxu0 0.0
    %318 = vmatpush2.xpose.msra.mxu0 0.0
    %319 = vmatprep.mubr.f32.mxu0 0.0
    %320 = vmatmul.mubr.f32.gmra.mxu0 %v244
    %v321 = vpop.f32.mrf.mxu0
    %v322 = vadd.f32 %v253, %v321
    %v323 = vpop.f32.mrf.mxu0
    %324 = vdwg.mxu0
    %325 = vst.msk [vmem:[#allocation9] sm:$0xff] %vm75, %v322
    // Predicated region
    $region42: #{tpu_custom_call.1} parent=1 // pred_check
      _
    $region43: #{tpu_custom_call.1} parent=1 // pred_check_branch
      %327 = sbr.rel (0) target = $region45
    $region44: #{tpu_custom_call.1} parent=1 // pred_region
      %s329 = ssub.s32 128, 128
      %330 = vsyncadd [#allocation5], %s329
      %s332 = sshll.u32 [#allocation9], 4
      %s333 = int_to_ptr.vmem [resolvable:$true] %s332
      %335 = dma.vmem_to_hbm [thread:$0]  %s333, 128, %s7, [#allocation5]
    $region45: #{tpu_custom_call.1} parent=1 // pred_fallthru
      _
    // Predicated region
    $region46: #{tpu_custom_call.1} parent=1 // pred_check
      _
    $region47: #{tpu_custom_call.1} parent=1 // pred_check_branch
      %337 = sbr.rel (0) target = $region49
    $region48: #{tpu_custom_call.1} parent=1 // pred_region
      %338 = dma.done [#allocation5], 128
    $region49: #{tpu_custom_call.1} parent=1 // pred_fallthru
      _
    %339 = vsyncpa [#allocation4], 1
    %340 = vsyncpa [#allocation7], 1
    %341 = vsyncpa [#allocation5], 1

</llo_original>
